<compile_context>
chip_gen: v5e
topology: v5e:2x2
jax: 0.10.0
libtpu: 0.0.40
codegen_flags: <defaults>
</compile_context>

<pallas_src>
import jax
import jax.numpy as jnp
from jax.experimental import pallas as pl
from jax.experimental.pallas import tpu as pltpu

PATCH = 4
FEATURE_SIZE = 2048        # resnet50 branch of the config
NUM_SHAPE = 100            # config.arch.num_shape
OUT_PAD = 128              # lane-dense padded head output (>= NUM_SHAPE)
B_PAD = 8                  # sublane-dense padded batch
K_PAD = 128                # lane-dense padded patch-feature dim (>= C*PATCH*PATCH)


def _shape_encoder_kernel(pooled_ref, w_ref, b_ref, out_ref):
    # Single MXU pass: pooled patch features @ fused (backbone @ head) weights.
    out_ref[...] = jnp.dot(pooled_ref[...], w_ref[...],
                           preferred_element_type=jnp.float32) + b_ref[...]


def run_shape_encoder(pooled, w_fused, b_head):
    b_pad, k_pad = pooled.shape
    out_pad = w_fused.shape[1]
    cost = pl.CostEstimate(
        flops=2 * b_pad * k_pad * out_pad,
        bytes_accessed=4 * (pooled.size + w_fused.size + b_head.size
                            + b_pad * out_pad),
        transcendentals=0)
    return pl.pallas_call(
        _shape_encoder_kernel,
        out_shape=jax.ShapeDtypeStruct((b_pad, out_pad), jnp.float32),
        # No grid: single invocation, whole arrays resident in VMEM (~70 KiB),
        # no pipeline / double-buffering overhead.
        in_specs=[
            pl.BlockSpec(memory_space=pltpu.MemorySpace.VMEM),   # pooled (8,128)
            pl.BlockSpec(memory_space=pltpu.MemorySpace.VMEM),   # W_fused (128,128)
            pl.BlockSpec(memory_space=pltpu.MemorySpace.VMEM),   # bias (1,128)
        ],
        out_specs=pl.BlockSpec(memory_space=pltpu.MemorySpace.VMEM),
        cost_estimate=cost,
    )(pooled, w_fused, b_head)


def pool_patches_nchw(img, patch):
    """Global average over patches, padded to (B_PAD, K_PAD), transpose-free.

    adaptive_avg_pool2d((1,1)) over a linear patch embedding equals averaging
    the im2col rows first; averaging over the (hp, wp) axes directly gives the
    identical (c, ph, pw)-ordered K vector without materialising (B, P, K).
    """
    b, c, h, w = img.shape
    hp, wp = h // patch, w // patch
    x = img.reshape(b, c, hp, patch, wp, patch)
    pooled = jnp.mean(x, axis=(2, 4)).reshape(b, c * patch * patch)   # (B, K)
    pooled = jnp.pad(pooled,
                     ((0, B_PAD - b), (0, K_PAD - pooled.shape[1])))
    return pooled


def make_params(key, c_in, zero_head=True):
    k = c_in * PATCH * PATCH
    k_bb, k_w, k_b = jax.random.split(key, 3)
    # Backbone stand-in weights (deterministic).
    wbb = 0.05 * jax.random.normal(k_bb, (k, FEATURE_SIZE), jnp.float32)
    if zero_head:
        # Shape head mirrors PyTorch init_weights(): weight *= 0, bias *= 0.
        w_head = jnp.zeros((FEATURE_SIZE, NUM_SHAPE), jnp.float32)
        b_head = jnp.zeros((NUM_SHAPE,), jnp.float32)
    else:
        # Nonzero head used only for the reference correctness check.
        w_head = 0.02 * jax.random.normal(k_w, (FEATURE_SIZE, NUM_SHAPE),
                                          jnp.float32)
        b_head = 0.02 * jax.random.normal(k_b, (NUM_SHAPE,), jnp.float32)
    # Offline fusion of the two linear maps (valid only while the backbone
    # stand-in is linear).  Padded K rows / output lanes are zero.
    w_fused = wbb @ w_head                                    # (K, NUM_SHAPE)
    w_fused = jnp.pad(w_fused, ((0, K_PAD - k), (0, OUT_PAD - NUM_SHAPE)))
    b_pad = jnp.pad(b_head, (0, OUT_PAD - NUM_SHAPE)).reshape(1, OUT_PAD)
    return {"w_fused": w_fused, "b_head_padded": b_pad,
            "wbb": wbb, "w_head": w_head, "b_head": b_head}


def shape_encoder_forward(img, params):
    b = img.shape[0]
    pooled = pool_patches_nchw(img, PATCH)
    out = run_shape_encoder(pooled, params["w_fused"], params["b_head_padded"])
    return {"shape_params": out[:b, :NUM_SHAPE]}


def shape_encoder_reference(img, params):
    """Plain-jnp, unfused reference: pool -> backbone stand-in -> head."""
    b, c = img.shape[0], img.shape[1]
    k = c * PATCH * PATCH
    pooled = pool_patches_nchw(img, PATCH)[:b, :k]
    feat = pooled @ params["wbb"]                      # (B, 2048)
    return feat @ params["w_head"] + params["b_head"]  # (B, NUM_SHAPE)


if __name__ == "__main__":
    key = jax.random.PRNGKey(0)
    k_img, k_par = jax.random.split(key)
    img = jax.random.normal(k_img, (2, 3, 16, 16), jnp.float32)   # NCHW

    # 1) Spec path: zero-initialised head -> output must be exactly zero.
    params = make_params(k_par, c_in=3, zero_head=True)
    out = jax.block_until_ready(jax.jit(shape_encoder_forward)(img, params))
    assert out["shape_params"].shape == (2, NUM_SHAPE)
    assert bool(jnp.all(jnp.abs(out["shape_params"]) < 1e-6))

    # 2) Nonzero-head path: kernel (fused weights) vs. plain-jnp unfused
    #    reference, to exercise indexing / bias broadcast in the matmul.
    params_nz = make_params(k_par, c_in=3, zero_head=False)
    out_nz = jax.block_until_ready(
        jax.jit(shape_encoder_forward)(img, params_nz))
    ref = shape_encoder_reference(img, params_nz)
    assert out_nz["shape_params"].shape == ref.shape
    assert bool(jnp.allclose(out_nz["shape_params"], ref,
                             atol=1e-4, rtol=1e-4))

    print("KERNEL_OK")
</pallas_src>

<mosaic_0001>
module attributes {stable_mosaic.version = 11 : i64} {
  func.func @_shape_encoder_kernel(%arg0: memref<8x128xf32, #tpu.memory_space<vmem>>, %arg1: memref<128x128xf32, #tpu.memory_space<vmem>>, %arg2: memref<1x128xf32, #tpu.memory_space<vmem>>, %arg3: memref<8x128xf32, #tpu.memory_space<vmem>>) attributes {dimension_semantics = [], scalar_prefetch = 0 : i64, scratch_operands = 0 : i64, tpu.core_type = #tpu.core_type<tc>} {
    %c0 = arith.constant 0 : index
    %c0_0 = arith.constant 0 : index
    %0 = vector.load %arg0[%c0, %c0_0] : memref<8x128xf32, #tpu.memory_space<vmem>>, vector<8x128xf32>
    %c0_1 = arith.constant 0 : index
    %c0_2 = arith.constant 0 : index
    %1 = vector.load %arg1[%c0_1, %c0_2] : memref<128x128xf32, #tpu.memory_space<vmem>>, vector<128x128xf32>
    %cst = arith.constant dense<0.000000e+00> : vector<8x128xf32>
    %2 = tpu.matmul %0, %1, %cst {dimension_numbers = #tpu.dot_dimension_numbers<[1], [0], [0], [1], [0, 0, 1, 1], [], []>} : vector<8x128xf32>, vector<128x128xf32>, vector<8x128xf32> -> vector<8x128xf32>
    %c0_3 = arith.constant 0 : index
    %c0_4 = arith.constant 0 : index
    %3 = vector.load %arg2[%c0_3, %c0_4] : memref<1x128xf32, #tpu.memory_space<vmem>>, vector<1x128xf32>
    %4 = vector.broadcast %3 : vector<1x128xf32> to vector<8x128xf32>
    %5 = arith.addf %2, %4 : vector<8x128xf32>
    %c0_5 = arith.constant 0 : index
    %c0_6 = arith.constant 0 : index
    %6 = vector.load %arg3[%c0_5, %c0_6] : memref<8x128xf32, #tpu.memory_space<vmem>>, vector<8x128xf32>
    tpu.vector_store %arg3[%c0_5, %c0_6], %5 {strides = array<i32>} : memref<8x128xf32, #tpu.memory_space<vmem>>, vector<8x128xf32>,
    return
  }
}

</mosaic_0001>

<llo_original>
// kernel: shape_encoder_forward.1
$region0: #{shape_encoder_forward.1}
  #allocation0 [shape = 'u32[]', space=smem, size = 0x4, offset = 0x4, fixed_abs, tag = 'smem constant byte address 0x4 - core index']
  #allocation1 [shape = 'u32[72,128]{1,0:T(1,128)}', space=vmem, size = 0x9000, scoped, tag = 'internal scratch']
  %s0 = inlined_call_operand.vmem [shape: f32[8,128], index: 0, kind: input, shape index: {}]
  %s1 = inlined_call_operand.vmem [shape: f32[128,128], index: 1, kind: input, shape index: {}]
  %s2 = inlined_call_operand.vmem [shape: f32[1,128], index: 2, kind: input, shape index: {}]
  %s3 = inlined_call_operand.vmem [shape: f32[8,128], index: 3, kind: output, shape index: {}]
  %s4 = sld [smem:[#allocation0]]
  $region22: #{shape_encoder_forward.1} parent=0
    _
  %s6 = ssub.s32 1, %s4
  %s7 = scalar_select 0, %s6, %s4
  // Predicated region
  $region2: #{shape_encoder_forward.1} parent=0 // pred_check
    _
  $region3: #{shape_encoder_forward.1} parent=0 // pred_check_branch
    %9 = sbr.rel (0) target = $region5
  $region4: #{shape_encoder_forward.1} parent=0 // pred_region
    _
  $region5: #{shape_encoder_forward.1} parent=0 // pred_fallthru
    _
  // Predicated region
  $region6: #{shape_encoder_forward.1} parent=0 // pred_check
    _
  $region7: #{shape_encoder_forward.1} parent=0 // pred_check_branch
    %11 = sbr.rel (0) target = $region9
  $region8: #{shape_encoder_forward.1} parent=0 // pred_region
    _
  $region9: #{shape_encoder_forward.1} parent=0 // pred_fallthru
    _
  // Predicated region
  $region10: #{shape_encoder_forward.1} parent=0 // pred_check
    _
  $region11: #{shape_encoder_forward.1} parent=0 // pred_check_branch
    %13 = sbr.rel (0) target = $region13
  $region12: #{shape_encoder_forward.1} parent=0 // pred_region
    _
  $region13: #{shape_encoder_forward.1} parent=0 // pred_fallthru
    _
  %v14 = vld [vmem:[%s0] sm:$0xff]
  %v15 = vld [vmem:[%s1] sm:$0xff]
  %v16 = vld [vmem:[%s1 + $0x8] sm:$0xff]
  %v17 = vld [vmem:[%s1 + $0x10] sm:$0xff]
  %v18 = vld [vmem:[%s1 + $0x18] sm:$0xff]
  %v19 = vld [vmem:[%s1 + $0x20] sm:$0xff]
  %v20 = vld [vmem:[%s1 + $0x28] sm:$0xff]
  %v21 = vld [vmem:[%s1 + $0x30] sm:$0xff]
  %v22 = vld [vmem:[%s1 + $0x38] sm:$0xff]
  %v23 = vld [vmem:[%s1 + $0x40] sm:$0xff]
  %v24 = vld [vmem:[%s1 + $0x48] sm:$0xff]
  %v25 = vld [vmem:[%s1 + $0x50] sm:$0xff]
  %v26 = vld [vmem:[%s1 + $0x58] sm:$0xff]
  %v27 = vld [vmem:[%s1 + $0x60] sm:$0xff]
  %v28 = vld [vmem:[%s1 + $0x68] sm:$0xff]
  %v29 = vld [vmem:[%s1 + $0x70] sm:$0xff]
  %v30 = vld [vmem:[%s1 + $0x78] sm:$0xff]
  %v31 = vld [vmem:[%s2] sm:$0x1]
  %v33 = vperm.slane %v31, 0
  %35 = vmatpush.msra.mxu0 %v30
  %36 = vmatpush.msra.mxu0 %v29
  %37 = vmatpush.msra.mxu0 %v28
  %38 = vmatpush.msra.mxu0 %v27
  %39 = vmatpush.msra.mxu0 %v26
  %40 = vmatpush.msra.mxu0 %v25
  %41 = vmatpush.msra.mxu0 %v24
  %42 = vmatpush.msra.mxu0 %v23
  %43 = vmatpush.msra.mxu0 %v22
  %44 = vmatpush.msra.mxu0 %v21
  %45 = vmatpush.msra.mxu0 %v20
  %46 = vmatpush.msra.mxu0 %v19
  %47 = vmatpush.msra.mxu0 %v18
  %48 = vmatpush.msra.mxu0 %v17
  %49 = vmatpush.msra.mxu0 %v16
  %50 = vmatpush.msra.mxu0 %v15
  %51 = vmatmul.f32.gmra.mxu0 %v14
  %v52 = vpop.f32.mrf.mxu0
  %v53 = vadd.f32 %v33, %v52
  %54 = vdwg.mxu0
  %55 = vst [vmem:[%s3] sm:$0xff] %v53
  // Predicated region
  $region14: #{shape_encoder_forward.1} parent=0 // pred_check
    _
  $region15: #{shape_encoder_forward.1} parent=0 // pred_check_branch
    %57 = sbr.rel (0) target = $region17
  $region16: #{shape_encoder_forward.1} parent=0 // pred_region
    _
  $region17: #{shape_encoder_forward.1} parent=0 // pred_fallthru
    _
  // Predicated region
  $region18: #{shape_encoder_forward.1} parent=0 // pred_check
    _
  $region19: #{shape_encoder_forward.1} parent=0 // pred_check_branch
    %59 = sbr.rel (0) target = $region21
  $region20: #{shape_encoder_forward.1} parent=0 // pred_region
    _
  $region21: #{shape_encoder_forward.1} parent=0 // pred_fallthru
    _

</llo_original>
